<compile_context>
chip_gen: v7x
topology: tpu7x:2x2x1
jax: 0.10.0
libtpu: 0.0.40
codegen_flags: <defaults>
</compile_context>

<pallas_src>
import functools
import math

import jax
import jax.numpy as jnp
from jax.experimental import pallas as pl
from jax.experimental.pallas import tpu as pltpu


def _round_up(x, mult):
    return ((x + mult - 1) // mult) * mult


def _angular_penalty_kernel(x_ref, lab_ref, loss_ref, max_sc, sum_sc, tgt_sc, *,
                            loss_type, s, m, eps, cos_m, sin_m, num_classes):
    """One (TN, TC) tile of logits; accumulates a stable row log-sum-exp."""
    j = pl.program_id(1)                      # class-tile index (reduction axis)
    tn, tc = x_ref.shape

    @pl.when(j == 0)
    def _init():
        max_sc[...] = jnp.full_like(max_sc, -jnp.inf)
        sum_sc[...] = jnp.zeros_like(sum_sc)
        tgt_sc[...] = jnp.zeros_like(tgt_sc)

    x = x_ref[...].astype(jnp.float32)        # (TN, TC) cosine logits (cast in-kernel)
    labels = lab_ref[...]                     # (TN, 1) int32, same block for all j

    # Global class index of each lane in this tile; mask padded remainder lanes.
    col = j * tc + jax.lax.broadcasted_iota(jnp.int32, (tn, tc), 1)
    valid = col < num_classes
    onehot = col == labels                    # labels < num_classes => never hits pad

    # Target cosine gather (label column appears in exactly one class tile).
    tgt_sc[...] += jnp.sum(jnp.where(onehot, x, 0.0), axis=1, keepdims=True)

    # Numerically-stable accumulation of sum_j exp(s * x_ij) over valid classes.
    sx = jnp.where(valid, s * x, -jnp.inf)    # padded lanes -> exp(...) == 0
    m_tile = jnp.max(sx, axis=1, keepdims=True)          # (TN, 1), always finite
    m_new = jnp.maximum(max_sc[...], m_tile)
    p = jnp.exp(sx - m_new)
    sum_sc[...] = (sum_sc[...] * jnp.exp(max_sc[...] - m_new)
                   + jnp.sum(p, axis=1, keepdims=True))
    max_sc[...] = m_new

    @pl.when(j == pl.num_programs(1) - 1)
    def _finalize():
        t_raw = tgt_sc[...]                   # target cosine, (TN, 1)
        row_max = max_sc[...]
        if loss_type == "cosface":
            numerator = s * (t_raw - m)
        else:  # arcface: cos(acos(t) + m) == t*cos(m) - sqrt(1 - t^2)*sin(m)
            t = jnp.clip(t_raw, -1.0 + eps, 1.0 - eps)
            numerator = s * (t * cos_m - jnp.sqrt(1.0 - t * t) * sin_m)
        # denominator = exp(numerator) + sum_{j != y} exp(s * x_ij)
        # work in the row_max-shifted domain (row_max >= s*t_raw, so no overflow)
        sum_excl = jnp.maximum(sum_sc[...] - jnp.exp(s * t_raw - row_max), 0.0)
        log_den = row_max + jnp.log(jnp.exp(numerator - row_max) + sum_excl)
        loss_ref[...] = numerator - log_den   # per-row L; mean/sum done in wrapper


def angular_penalty_sm_loss(output, labels, *, loss_type="arcface",
                            reduction="mean", eps=1e-7, s=None, m=None,
                            block_n=256, block_c=2048):
    """JAX/Pallas equivalent of AngularPenaltySMLoss.forward.

    output: (N, C) float array of cosine similarities (any float dtype).
    labels: (N,)  int array of class indices.
    Returns a scalar float32 loss.
    """
    loss_type = loss_type.lower()
    assert loss_type in ("arcface", "sphereface", "cosface")
    assert reduction in ("mean", "sum")
    if loss_type == "arcface":
        s = 64.0 if not s else s
        m = 0.5 if not m else m
    elif loss_type == "sphereface":
        s = 64.0 if not s else s
        m = 1.35 if not m else m
    else:  # cosface
        s = 30.0 if not s else s
        m = 0.4 if not m else m

    if loss_type == "sphereface":
        # TODO(synk): sphereface needs cos(m*acos(t)) with non-integer m; no clean
        # closed form without acos, which is not guaranteed to lower on the TPU VPU/EUP.
        raise NotImplementedError("sphereface not implemented in-kernel")

    n, c = output.shape
    labels2d = labels.astype(jnp.int32).reshape(n, 1)

    # Tile sizes: sublane multiple depends on input dtype packing, lane multiple 128.
    sub = 8 if output.dtype.itemsize >= 4 else (16 if output.dtype.itemsize == 2 else 32)
    tn = min(_round_up(block_n, sub), _round_up(n, sub))
    tc = min(_round_up(block_c, 128), _round_up(c, 128))
    grid = (pl.cdiv(n, tn), pl.cdiv(c, tc))

    kernel = functools.partial(
        _angular_penalty_kernel,
        loss_type=loss_type, s=float(s), m=float(m), eps=float(eps),
        cos_m=math.cos(float(m)), sin_m=math.sin(float(m)), num_classes=c)

    per_row = pl.pallas_call(
        kernel,
        out_shape=jax.ShapeDtypeStruct((n, 1), jnp.float32),
        grid=grid,
        in_specs=[
            pl.BlockSpec((tn, tc), lambda i, j: (i, j)),   # logits tile (native dtype)
            pl.BlockSpec((tn, 1), lambda i, j: (i, 0)),    # labels, reused across class tiles
        ],
        out_specs=pl.BlockSpec((tn, 1), lambda i, j: (i, 0)),
        scratch_shapes=[
            pltpu.VMEM((tn, 1), jnp.float32),   # running row max of s*x
            pltpu.VMEM((tn, 1), jnp.float32),   # running sum of exp(s*x - max)
            pltpu.VMEM((tn, 1), jnp.float32),   # target cosine
        ],
        compiler_params=pltpu.CompilerParams(
            dimension_semantics=("parallel", "arbitrary"),
            vmem_limit_bytes=48 * 1024 * 1024),
    )(output, labels2d)

    L = per_row[:, 0]
    if reduction == "mean":
        return -jnp.mean(L)
    return -jnp.sum(L)


def _reference(output, labels, *, loss_type, s, m, eps=1e-7, reduction="mean"):
    """Plain-JAX reference matching the PyTorch module."""
    n, c = output.shape
    target = output[jnp.arange(n), labels]
    if loss_type == "cosface":
        numerator = s * (target - m)
    else:  # arcface
        t = jnp.clip(target, -1.0 + eps, 1.0 - eps)
        numerator = s * jnp.cos(jnp.arccos(t) + m)
    onehot = jax.nn.one_hot(labels, c, dtype=bool)
    excl = jnp.where(onehot, 0.0, jnp.exp(s * output))
    denom = jnp.exp(numerator) + jnp.sum(excl, axis=1)
    L = numerator - jnp.log(denom)
    return -jnp.mean(L) if reduction == "mean" else -jnp.sum(L)


if __name__ == "__main__":
    key = jax.random.PRNGKey(0)
    k1, k2 = jax.random.split(key)

    # Small demo shapes: batch 16, 320 classes.  320 is NOT a multiple of the
    # 128-wide class tile, so the remainder-masking path is exercised; small
    # explicit tiles force a multi-tile (2 x 3) grid.
    N, C = 16, 320
    output = jax.random.uniform(k1, (N, C), jnp.float32, minval=-1.0, maxval=1.0)
    labels = jax.random.randint(k2, (N,), 0, C, dtype=jnp.int32)

    # arcface, mean reduction
    loss_arc = angular_penalty_sm_loss(output, labels, loss_type="arcface",
                                       reduction="mean", block_n=8, block_c=128)
    loss_arc = jax.block_until_ready(loss_arc)
    ref_arc = _reference(output, labels, loss_type="arcface", s=64.0, m=0.5,
                         reduction="mean")
    assert jnp.allclose(loss_arc, ref_arc, rtol=2e-4, atol=2e-3), (loss_arc, ref_arc)

    # cosface, sum reduction
    loss_cos = angular_penalty_sm_loss(output, labels, loss_type="cosface",
                                       reduction="sum", block_n=8, block_c=128)
    loss_cos = jax.block_until_ready(loss_cos)
    ref_cos = _reference(output, labels, loss_type="cosface", s=30.0, m=0.4,
                         reduction="sum")
    assert jnp.allclose(loss_cos, ref_cos, rtol=2e-4, atol=2e-3), (loss_cos, ref_cos)

    print("KERNEL_OK")
</pallas_src>

<mosaic_0001>
module attributes {stable_mosaic.version = 11 : i64} {
  func.func @_angular_penalty_kernel(%arg0: i32, %arg1: i32, %arg2: memref<8x128xf32, #tpu.memory_space<vmem>>, %arg3: memref<8x1xi32, #tpu.memory_space<vmem>>, %arg4: memref<8x1xf32, #tpu.memory_space<vmem>>, %arg5: memref<8x1xf32, #tpu.memory_space<vmem>>, %arg6: memref<8x1xf32, #tpu.memory_space<vmem>>, %arg7: memref<8x1xf32, #tpu.memory_space<vmem>>) attributes {dimension_semantics = [#tpu.dimension_semantics<parallel>, #tpu.dimension_semantics<arbitrary>], iteration_bounds = array<i64: 2, 3>, scalar_prefetch = 0 : i64, scratch_operands = 3 : i64, tpu.core_type = #tpu.core_type<tc>, window_params = [{transform_indices = @transform_0, window_bounds = array<i64: 8, 128>}, {transform_indices = @transform_1, window_bounds = array<i64: 8, 1>}, {transform_indices = @transform_2, window_bounds = array<i64: 8, 1>}]} {
    %c0_i32 = arith.constant 0 : i32
    %0 = arith.cmpi eq, %arg1, %c0_i32 : i32
    %1 = arith.extui %0 : i1 to i32
    %c0_i32_0 = arith.constant 0 : i32
    %2 = arith.cmpi ne, %1, %c0_i32_0 : i32
    scf.if %2 {
      %cst_24 = arith.constant 0xFF800000 : f32
      %44 = vector.broadcast %cst_24 : f32 to vector<8x1xf32>
      %c0_25 = arith.constant 0 : index
      %c0_26 = arith.constant 0 : index
      %45 = vector.load %arg5[%c0_25, %c0_26] : memref<8x1xf32, #tpu.memory_space<vmem>>, vector<8x1xf32>
      tpu.vector_store %arg5[%c0_25, %c0_26], %44 {strides = array<i32>} : memref<8x1xf32, #tpu.memory_space<vmem>>, vector<8x1xf32>,
      %cst_27 = arith.constant 0.000000e+00 : f32
      %46 = vector.broadcast %cst_27 : f32 to vector<8x1xf32>
      %c0_28 = arith.constant 0 : index
      %c0_29 = arith.constant 0 : index
      %47 = vector.load %arg6[%c0_28, %c0_29] : memref<8x1xf32, #tpu.memory_space<vmem>>, vector<8x1xf32>
      tpu.vector_store %arg6[%c0_28, %c0_29], %46 {strides = array<i32>} : memref<8x1xf32, #tpu.memory_space<vmem>>, vector<8x1xf32>,
      %cst_30 = arith.constant 0.000000e+00 : f32
      %48 = vector.broadcast %cst_30 : f32 to vector<8x1xf32>
      %c0_31 = arith.constant 0 : index
      %c0_32 = arith.constant 0 : index
      %49 = vector.load %arg7[%c0_31, %c0_32] : memref<8x1xf32, #tpu.memory_space<vmem>>, vector<8x1xf32>
      tpu.vector_store %arg7[%c0_31, %c0_32], %48 {strides = array<i32>} : memref<8x1xf32, #tpu.memory_space<vmem>>, vector<8x1xf32>,
    } else {
    }
    %c0 = arith.constant 0 : index
    %c0_1 = arith.constant 0 : index
    %3 = vector.load %arg2[%c0, %c0_1] : memref<8x128xf32, #tpu.memory_space<vmem>>, vector<8x128xf32>
    %c0_2 = arith.constant 0 : index
    %c0_3 = arith.constant 0 : index
    %4 = vector.load %arg3[%c0_2, %c0_3] : memref<8x1xi32, #tpu.memory_space<vmem>>, vector<8x1xi32>
    %c128_i32 = arith.constant 128 : i32
    %5 = arith.muli %arg1, %c128_i32 : i32
    %6 = tpu.iota {dimensions = array<i32: 1>} : vector<8x128xi32>
    %7 = vector.broadcast %5 : i32 to vector<8x128xi32>
    %8 = arith.addi %7, %6 : vector<8x128xi32>
    %c320_i32 = arith.constant 320 : i32
    %9 = vector.broadcast %c320_i32 : i32 to vector<8x128xi32>
    %10 = arith.cmpi slt, %8, %9 : vector<8x128xi32>
    %11 = vector.broadcast %4 : vector<8x1xi32> to vector<8x128xi32>
    %12 = arith.cmpi eq, %8, %11 : vector<8x128xi32>
    %c0_4 = arith.constant 0 : index
    %c0_5 = arith.constant 0 : index
    %13 = vector.load %arg7[%c0_4, %c0_5] : memref<8x1xf32, #tpu.memory_space<vmem>>, vector<8x1xf32>
    %cst = arith.constant 0.000000e+00 : f32
    %14 = vector.broadcast %cst : f32 to vector<8x128xf32>
    %15 = arith.select %12, %3, %14 : vector<8x128xi1>, vector<8x128xf32>
    %cst_6 = arith.constant dense<0.000000e+00> : vector<8xf32>
    %16 = vector.multi_reduction <add>, %15, %cst_6 [1] : vector<8x128xf32> to vector<8xf32>
    %17 = vector.shape_cast %16 : vector<8xf32> to vector<8x1xf32>
    %18 = arith.addf %13, %17 : vector<8x1xf32>
    %c0_7 = arith.constant 0 : index
    %c0_8 = arith.constant 0 : index
    %19 = vector.load %arg7[%c0_7, %c0_8] : memref<8x1xf32, #tpu.memory_space<vmem>>, vector<8x1xf32>
    tpu.vector_store %arg7[%c0_7, %c0_8], %18 {strides = array<i32>} : memref<8x1xf32, #tpu.memory_space<vmem>>, vector<8x1xf32>,
    %cst_9 = arith.constant 6.400000e+01 : f32
    %20 = vector.broadcast %cst_9 : f32 to vector<8x128xf32>
    %21 = arith.mulf %20, %3 : vector<8x128xf32>
    %cst_10 = arith.constant 0xFF800000 : f32
    %22 = vector.broadcast %cst_10 : f32 to vector<8x128xf32>
    %23 = arith.select %10, %21, %22 : vector<8x128xi1>, vector<8x128xf32>
    %cst_11 = arith.constant dense<0xFF800000> : vector<8xf32>
    %24 = vector.multi_reduction <maximumf>, %23, %cst_11 [1] : vector<8x128xf32> to vector<8xf32>
    %25 = vector.shape_cast %24 : vector<8xf32> to vector<8x1xf32>
    %c0_12 = arith.constant 0 : index
    %c0_13 = arith.constant 0 : index
    %26 = vector.load %arg5[%c0_12, %c0_13] : memref<8x1xf32, #tpu.memory_space<vmem>>, vector<8x1xf32>
    %27 = arith.maximumf %26, %25 : vector<8x1xf32>
    %28 = vector.broadcast %27 : vector<8x1xf32> to vector<8x128xf32>
    %29 = arith.subf %23, %28 : vector<8x128xf32>
    %30 = math.exp %29 : vector<8x128xf32>
    %c0_14 = arith.constant 0 : index
    %c0_15 = arith.constant 0 : index
    %31 = vector.load %arg6[%c0_14, %c0_15] : memref<8x1xf32, #tpu.memory_space<vmem>>, vector<8x1xf32>
    %c0_16 = arith.constant 0 : index
    %c0_17 = arith.constant 0 : index
    %32 = vector.load %arg5[%c0_16, %c0_17] : memref<8x1xf32, #tpu.memory_space<vmem>>, vector<8x1xf32>
    %33 = arith.subf %32, %27 : vector<8x1xf32>
    %34 = math.exp %33 : vector<8x1xf32>
    %35 = arith.mulf %31, %34 : vector<8x1xf32>
    %cst_18 = arith.constant dense<0.000000e+00> : vector<8xf32>
    %36 = vector.multi_reduction <add>, %30, %cst_18 [1] : vector<8x128xf32> to vector<8xf32>
    %37 = vector.shape_cast %36 : vector<8xf32> to vector<8x1xf32>
    %38 = arith.addf %35, %37 : vector<8x1xf32>
    %c0_19 = arith.constant 0 : index
    %c0_20 = arith.constant 0 : index
    %39 = vector.load %arg6[%c0_19, %c0_20] : memref<8x1xf32, #tpu.memory_space<vmem>>, vector<8x1xf32>
    tpu.vector_store %arg6[%c0_19, %c0_20], %38 {strides = array<i32>} : memref<8x1xf32, #tpu.memory_space<vmem>>, vector<8x1xf32>,
    %c0_21 = arith.constant 0 : index
    %c0_22 = arith.constant 0 : index
    %40 = vector.load %arg5[%c0_21, %c0_22] : memref<8x1xf32, #tpu.memory_space<vmem>>, vector<8x1xf32>
    tpu.vector_store %arg5[%c0_21, %c0_22], %27 {strides = array<i32>} : memref<8x1xf32, #tpu.memory_space<vmem>>, vector<8x1xf32>,
    %c2_i32 = arith.constant 2 : i32
    %41 = arith.cmpi eq, %arg1, %c2_i32 : i32
    %42 = arith.extui %41 : i1 to i32
    %c0_i32_23 = arith.constant 0 : i32
    %43 = arith.cmpi ne, %42, %c0_i32_23 : i32
    scf.if %43 {
      %c0_24 = arith.constant 0 : index
      %c0_25 = arith.constant 0 : index
      %44 = vector.load %arg7[%c0_24, %c0_25] : memref<8x1xf32, #tpu.memory_space<vmem>>, vector<8x1xf32>
      %c0_26 = arith.constant 0 : index
      %c0_27 = arith.constant 0 : index
      %45 = vector.load %arg5[%c0_26, %c0_27] : memref<8x1xf32, #tpu.memory_space<vmem>>, vector<8x1xf32>
      %cst_28 = arith.constant -0.99999988 : f32
      %cst_29 = arith.constant 0.99999988 : f32
      %46 = vector.broadcast %cst_28 : f32 to vector<8x1xf32>
      %47 = arith.maximumf %46, %44 : vector<8x1xf32>
      %48 = vector.broadcast %cst_29 : f32 to vector<8x1xf32>
      %49 = arith.minimumf %48, %47 : vector<8x1xf32>
      %cst_30 = arith.constant 0.87758255 : f32
      %50 = vector.broadcast %cst_30 : f32 to vector<8x1xf32>
      %51 = arith.mulf %49, %50 : vector<8x1xf32>
      %52 = arith.mulf %49, %49 : vector<8x1xf32>
      %cst_31 = arith.constant 1.000000e+00 : f32
      %53 = vector.broadcast %cst_31 : f32 to vector<8x1xf32>
      %54 = arith.subf %53, %52 : vector<8x1xf32>
      %55 = math.sqrt %54 : vector<8x1xf32>
      %cst_32 = arith.constant 0.47942555 : f32
      %56 = vector.broadcast %cst_32 : f32 to vector<8x1xf32>
      %57 = arith.mulf %55, %56 : vector<8x1xf32>
      %58 = arith.subf %51, %57 : vector<8x1xf32>
      %cst_33 = arith.constant 6.400000e+01 : f32
      %59 = vector.broadcast %cst_33 : f32 to vector<8x1xf32>
      %60 = arith.mulf %59, %58 : vector<8x1xf32>
      %c0_34 = arith.constant 0 : index
      %c0_35 = arith.constant 0 : index
      %61 = vector.load %arg6[%c0_34, %c0_35] : memref<8x1xf32, #tpu.memory_space<vmem>>, vector<8x1xf32>
      %cst_36 = arith.constant 6.400000e+01 : f32
      %62 = vector.broadcast %cst_36 : f32 to vector<8x1xf32>
      %63 = arith.mulf %62, %44 : vector<8x1xf32>
      %64 = arith.subf %63, %45 : vector<8x1xf32>
      %65 = math.exp %64 : vector<8x1xf32>
      %66 = arith.subf %61, %65 : vector<8x1xf32>
      %cst_37 = arith.constant 0.000000e+00 : f32
      %67 = vector.broadcast %cst_37 : f32 to vector<8x1xf32>
      %68 = arith.maximumf %66, %67 : vector<8x1xf32>
      %69 = arith.subf %60, %45 : vector<8x1xf32>
      %70 = math.exp %69 : vector<8x1xf32>
      %71 = arith.addf %70, %68 : vector<8x1xf32>
      %72 = math.log %71 : vector<8x1xf32>
      %73 = arith.addf %45, %72 : vector<8x1xf32>
      %74 = arith.subf %60, %73 : vector<8x1xf32>
      %c0_38 = arith.constant 0 : index
      %c0_39 = arith.constant 0 : index
      %75 = vector.load %arg4[%c0_38, %c0_39] : memref<8x1xf32, #tpu.memory_space<vmem>>, vector<8x1xf32>
      tpu.vector_store %arg4[%c0_38, %c0_39], %74 {strides = array<i32>} : memref<8x1xf32, #tpu.memory_space<vmem>>, vector<8x1xf32>,
    } else {
    }
    return
  }
  func.func @transform_0(%arg0: i32, %arg1: i32) -> (i32, i32) {
    %c0_i32 = arith.constant 0 : i32
    return %arg0, %arg1 : i32, i32
  }
  func.func @transform_1(%arg0: i32, %arg1: i32) -> (i32, i32) {
    %c0_i32 = arith.constant 0 : i32
    %c0_i32_0 = arith.constant 0 : i32
    return %arg0, %c0_i32 : i32, i32
  }
  func.func @transform_2(%arg0: i32, %arg1: i32) -> (i32, i32) {
    %c0_i32 = arith.constant 0 : i32
    %c0_i32_0 = arith.constant 0 : i32
    return %arg0, %c0_i32 : i32, i32
  }
}

</mosaic_0001>

<llo_original>
// kernel: tpu_custom_call.1
$region0: #{tpu_custom_call.1}
  #allocation0 [shape = 'u32[]', space=smem, size = 0x4, offset = 0x4, fixed_abs, tag = 'smem constant byte address 0x4 - core index']
  #allocation1 [shape = 'u32[144,128]{1,0:T(1,128)}', space=vmem, size = 0x12000, scoped, tag = 'internal scratch']
  #allocation2 [shape = 'f32[8,1]{1,0:T(8,128)}', space=vmem, size = 0x1000, scoped, tag = 'scratch operand']
  #allocation3 [shape = 'f32[8,1]{1,0:T(8,128)}', space=vmem, size = 0x1000, scoped, tag = 'scratch operand']
  #allocation4 [shape = 'f32[8,1]{1,0:T(8,128)}', space=vmem, size = 0x1000, scoped, tag = 'scratch operand']
  %s0 = inlined_call_operand.hbm [shape: f32[16,320], index: 0, kind: input, shape index: {}]
  %s1 = inlined_call_operand.vmem [shape: s32[16,1], index: 1, kind: input, shape index: {}]
  %s2 = inlined_call_operand.vmem [shape: f32[16,1], index: 2, kind: output, shape index: {}]
  %s3 = sld [smem:[#allocation0]]
  $region53: #{tpu_custom_call.1} parent=0
    _
  %s5 = ssub.s32 1, %s3
  %s6 = scalar_select 0, %s5, %s3
  $region1: #{tpu_custom_call.1} parent=0
    #allocation5 [shape = 'u8[8192]{0}', space=vmem, size = 0x2000, scoped, tag = 'input window, operand 0']
    #allocation6 [shape = 's32[2]{0}', space=sflag, size = 0x8, scoped, tag = 'scoped memory for tpu_custom_call.1']
    %7 = vsyncpa [#allocation6], 0
    %s8 = scalar_lea.sflag [#allocation6], 1
    %9 = vsyncpa %s8, 0
    loop: start=0, step=1, limit=8
    $region2: #{tpu_custom_call.1} parent=1 // loop_pre_header
      _
    $region3: #{tpu_custom_call.1} parent=1 // loop_header
      %s11 = sphi 0, %s15
      %p12 = scmp.ge.s32.totalorder %s11, 8
      %s18 = sphi 0, %s30
      %s19 = sphi 0, %s26
      %s20 = sphi 0, %s18
      %s21 = sphi 0, %s19
      %s22 = sphi 0, %s20
      %s23 = sphi 0, %s21
      %s35 = sphi 0, %s37
      %s38 = sphi 0, %s35
      %s39 = sphi 0, %s38
      %s55 = sphi 0, %s39
      %s61 = sphi 0, %s63
      %s64 = sphi 0, %s61
      %s65 = sphi 0, %s64
      %s81 = sphi 0, %s65
      %s87 = sphi 0, %s89
      %s90 = sphi 0, %s87
      %s91 = sphi 0, %s90
      %s107 = sphi 0, %s91
    $region4: #{tpu_custom_call.1} parent=1 // loop_header_branch
      %14 = sbr.rel (%p12) target = $region8
    $region5: #{tpu_custom_call.1} parent=1 // loop_body
      %s16 = ssub.s32 %s11, 1
      %s17 = ssub.s32 %s11, 2
      %s24 = sadd.s32 1, %s19
      %p25 = scmp.ge.s32.totalorder %s24, 3
      %s26 = scalar_select %p25, 0, %s24
      %s27 = sadd.s32 1, %s18
      %s28 = scalar_select %p25, %s27, %s18
      %p29 = scmp.ge.s32.totalorder %s28, 2
      %s30 = scalar_select %p29, 0, %s28
      %s31 = ssub.s32 %s18, %s30
      %s32 = ssub.s32 %s19, %s26
      %s33 = sor.u32 %s31, %s32
      %p34 = scmp.eq.s32.totalorder %s33, 0
      %s36 = sadd.s32 %s35, 1
      %s37 = scalar_select %p34, %s35, %s36
      %p40 = pneg %p34
      %p41 = scmp.eq.s32.totalorder %s11, 5
      %p42 = por %p40, %p41
      %p43 = scmp.ne.s32.totalorder %s35, %s38
      %p44 = scmp.eq.s32.totalorder %s11, 0
      %p45 = por %p43, %p44
      %p46 = scmp.ne.s32.totalorder %s35, %s38
      %p47 = scmp.eq.s32.totalorder %s16, 5
      %p48 = por %p46, %p47
      %p49 = scmp.ne.s32.totalorder %s38, %s39
      %p50 = scmp.eq.s32.totalorder %s16, 0
      %p51 = por %p49, %p50
      %p52 = scmp.ne.s32.totalorder %s38, %s39
      %p53 = scmp.eq.s32.totalorder %s17, 5
      %p54 = por %p52, %p53
      %p56 = scmp.ne.s32.totalorder %s39, %s55
      %p57 = scmp.eq.s32.totalorder %s17, 0
      %p58 = por %p56, %p57
      %s59 = ssub.s32 %s18, %s30
      %p60 = scmp.eq.s32.totalorder %s59, 0
      %s62 = sadd.s32 %s61, 1
      %s63 = scalar_select %p60, %s61, %s62
      %p66 = pneg %p60
      %p67 = scmp.eq.s32.totalorder %s11, 5
      %p68 = por %p66, %p67
      %p69 = scmp.ne.s32.totalorder %s61, %s64
      %p70 = scmp.eq.s32.totalorder %s11, 0
      %p71 = por %p69, %p70
      %p72 = scmp.ne.s32.totalorder %s61, %s64
      %p73 = scmp.eq.s32.totalorder %s16, 5
      %p74 = por %p72, %p73
      %p75 = scmp.ne.s32.totalorder %s64, %s65
      %p76 = scmp.eq.s32.totalorder %s16, 0
      %p77 = por %p75, %p76
      %p78 = scmp.ne.s32.totalorder %s64, %s65
      %p79 = scmp.eq.s32.totalorder %s17, 5
      %p80 = por %p78, %p79
      %p82 = scmp.ne.s32.totalorder %s65, %s81
      %p83 = scmp.eq.s32.totalorder %s17, 0
      %p84 = por %p82, %p83
      %s85 = ssub.s32 %s18, %s30
      %p86 = scmp.eq.s32.totalorder %s85, 0
      %s88 = sadd.s32 %s87, 1
      %s89 = scalar_select %p86, %s87, %s88
      %p92 = pneg %p86
      %p93 = scmp.eq.s32.totalorder %s11, 5
      %p94 = por %p92, %p93
      %p95 = scmp.ne.s32.totalorder %s87, %s90
      %p96 = scmp.eq.s32.totalorder %s11, 0
      %p97 = por %p95, %p96
      %p98 = scmp.ne.s32.totalorder %s87, %s90
      %p99 = scmp.eq.s32.totalorder %s16, 5
      %p100 = por %p98, %p99
      %p101 = scmp.ne.s32.totalorder %s90, %s91
      %p102 = scmp.eq.s32.totalorder %s16, 0
      %p103 = por %p101, %p102
      %p104 = scmp.ne.s32.totalorder %s90, %s91
      %p105 = scmp.eq.s32.totalorder %s17, 5
      %p106 = por %p104, %p105
      %p108 = scmp.ne.s32.totalorder %s91, %s107
      %p109 = scmp.eq.s32.totalorder %s17, 0
      %p110 = por %p108, %p109
      %p111 = scmp.le.s32.totalorder 1, %s11
      %p112 = scmp.lt.s32.totalorder %s11, 7
      %p113 = pnand %p111, %p112
      %p114 = pneg %p113
      // Predicated region
      $region9: #{tpu_custom_call.1} parent=5 // pred_check
        _
      $region10: #{tpu_custom_call.1} parent=5 // pred_check_branch
        %116 = sbr.rel (%p113) target = $region12
      $region11: #{tpu_custom_call.1} parent=5 // pred_region
        %s117 = ssub.s32 %s11, 1
      $region12: #{tpu_custom_call.1} parent=5 // pred_fallthru
        _
      %p118 = scmp.lt.s32.totalorder %s11, 6
      // Predicated region
      $region13: #{tpu_custom_call.1} parent=5 // pred_check
        %p119 = pneg %p118
      $region14: #{tpu_custom_call.1} parent=5 // pred_check_branch
        %121 = sbr.rel (%p119) target = $region16
      $region15: #{tpu_custom_call.1} parent=5 // pred_region
        // Predicated region
        $region17: #{tpu_custom_call.1} parent=15 // pred_check
          %p122 = pneg %p45
        $region18: #{tpu_custom_call.1} parent=15 // pred_check_branch
          %124 = sbr.rel (%p122) target = $region20
        $region19: #{tpu_custom_call.1} parent=15 // pred_region
          %s125 = sand.u32 %s35, 1
          %s126 = scalar_lea.sflag [#allocation6], %s125
          %s127 = sand.u32 %s35, 1
          %s128 = smul.addr %s127, 8
          %s129 = scalar_lea.vmem [#allocation5], %s128
          %s131 = ssub.s32 128, 128
          %132 = vsyncadd %s126, %s131
          %s133 = smul.addr %s18, 3
          %s134 = sadd.s32 %s19, %s133
          %s135 = smul.addr %s134, 128
          %s136 = scalar_lea.hbm %s0, %s135
          %s138 = sshll.u32 %s129, 4
          %s139 = int_to_ptr.vmem [resolvable:$true] %s138
          %141 = dma.hbm_to_vmem [thread:$0]  %s136, 128, %s139, %s126
        $region20: #{tpu_custom_call.1} parent=15 // pred_fallthru
          _
        // Predicated region
        $region21: #{tpu_custom_call.1} parent=15 // pred_check
          %p142 = pneg %p71
        $region22: #{tpu_custom_call.1} parent=15 // pred_check_branch
          %144 = sbr.rel (%p142) target = $region24
        $region23: #{tpu_custom_call.1} parent=15 // pred_region
          %p145 = scmp.lt.s32.totalorder %s18, 1
          %s146 = scalar_select %p145, %s18, 1
          %s147 = smul.addr %s146, 8
          %s148 = scalar_lea.vmem %s1, %s147
        $region24: #{tpu_custom_call.1} parent=15 // pred_fallthru
          _
      $region16: #{tpu_custom_call.1} parent=5 // pred_fallthru
        _
      %p149 = scmp.le.s32.totalorder 1, %s11
      %p150 = scmp.lt.s32.totalorder %s11, 7
      %p151 = pnand %p149, %p150
      %p152 = pneg %p151
      // Predicated region
      $region25: #{tpu_custom_call.1} parent=5 // pred_check
        _
      $region26: #{tpu_custom_call.1} parent=5 // pred_check_branch
        %154 = sbr.rel (%p151) target = $region28
      $region27: #{tpu_custom_call.1} parent=5 // pred_region
        %s155 = ssub.s32 %s11, 1
        %s156 = sand.u32 %s38, 1
        %s157 = scalar_lea.sflag [#allocation6], %s156
        %s158 = sand.u32 %s38, 1
        %s159 = smul.addr %s158, 8
        %s160 = scalar_lea.vmem [#allocation5], %s159
        // Predicated region
        $region29: #{tpu_custom_call.1} parent=27 // pred_check
          %p161 = pneg %p51
        $region30: #{tpu_custom_call.1} parent=27 // pred_check_branch
          %163 = sbr.rel (%p161) target = $region32
        $region31: #{tpu_custom_call.1} parent=27 // pred_region
          %164 = dma.done %s157, 128
        $region32: #{tpu_custom_call.1} parent=27 // pred_fallthru
          _
        %s165 = sand.u32 %s38, 1
        %s166 = scalar_lea.sflag [#allocation6], %s165
        %s167 = sand.u32 %s38, 1
        %s168 = smul.addr %s167, 8
        %s169 = scalar_lea.vmem [#allocation5], %s168
        %p170 = pneg %p51
        %p171 = pneg %p48
        %p172 = scmp.lt.s32.totalorder %s20, 1
        %s173 = scalar_select %p172, %s20, 1
        %s174 = smul.addr %s173, 8
        %s175 = scalar_lea.vmem %s1, %s174
        %p176 = pneg %p77
        %p177 = pneg %p74
        %p178 = pneg %p103
        %p179 = pneg %p100
        %p180 = scmp.lt.s32.totalorder %s20, 1
        %s181 = scalar_select %p180, %s20, 1
        %s182 = smul.addr %s181, 8
        %s183 = scalar_lea.vmem %s2, %s182
        %p184 = scmp.lt.s32.totalorder %s20, 1
        %s185 = scalar_select %p184, %s20, 1
        %s186 = smul.addr %s185, 8
        %s187 = scalar_lea.vmem %s1, %s186
        %p188 = scmp.lt.s32.totalorder %s20, 1
        %s189 = scalar_select %p188, %s20, 1
        %s190 = smul.addr %s189, 8
        %s191 = scalar_lea.vmem %s2, %s190
        %p192 = scmp.eq.s32.totalorder %s21, 0
        // Predicated region
        $region33: #{tpu_custom_call.1} parent=27 // pred_check
          %p193 = pneg %p192
        $region34: #{tpu_custom_call.1} parent=27 // pred_check_branch
          %195 = sbr.rel (%p193) target = $region36
        $region35: #{tpu_custom_call.1} parent=27 // pred_region
          %vm196 = vcmask 7168
          %197 = vst.msk [vmem:[#allocation2] sm:$0xff] %vm196, -inf
          %198 = vst.msk [vmem:[#allocation3] sm:$0xff] %vm196, 0.0
          %199 = vst.msk [vmem:[#allocation4] sm:$0xff] %vm196, 0.0
        $region36: #{tpu_custom_call.1} parent=27 // pred_fallthru
          _
        %v200 = vld [vmem:[%s160] sm:$0xff]
        %v201 = vld [vmem:[%s187] sm:$0xff]
        %s202 = smul.u32 %s21, 128
        %v203 = vlaneseq
        %v204 = vand.u32 %v203, 127
        %v205 = vstv %s202
        %v206 = vadd.s32 %v205, %v204
        %vm207 = vcmp.lt.s32.totalorder %v206, 320
        %208 = vset.pattern.permute.xlu0 0
        %209 = vperm.xlu0 %208, %v201
        %v210 = vpop.permute.xlu0 %209
        %vm211 = vcmp.eq.s32.totalorder %v206, %v210
        %v212 = vld [vmem:[#allocation4] sm:$0xff]
        %v213 = vsel %vm211, %v200, 0.0
        %214 = vadd.xlane.f32.xlu0 %v213
        %v215 = vpop.xlane.xlu0 %214
        %v216 = vadd.f32 %v212, %v215
        %vm217 = vcmask 7168
        %218 = vst.msk [vmem:[#allocation4] sm:$0xff] %vm217, %v216
        %v219 = vmul.f32 %v200, 64.0
        %v220 = vsel %vm207, %v219, -inf
        %221 = vmax.xlane.f32.xlu0 %v220
        %v222 = vpop.xlane.xlu0 %221
        %v223 = vld [vmem:[#allocation2] sm:$0xff]
        %v224 = vmax.f32 %v223, %v222
        %226 = vset.pattern.permute.xlu0 0
        %227 = vperm.xlu0 %226, %v224
        %v228 = vpop.permute.xlu0 %227
        %v230 = vsub.f32 %v220, %v228
        %v231 = vmul.f32 %v230, 1.442695
        %v232 = vpow.pop %v231
        %v233 = vld [vmem:[#allocation3] sm:$0xff]
        %v234 = vsub.f32 %v223, %v224
        %v235 = vmul.f32 %v234, 1.442695
        %v236 = vpow.pop %v235
        %v237 = vmul.f32 %v233, %v236
        %238 = vadd.xlane.f32.xlu0 %v232
        %v239 = vpop.xlane.xlu0 %238
        %v240 = vadd.f32 %v237, %v239
        %241 = vst.msk [vmem:[#allocation3] sm:$0xff] %vm217, %v240
        %242 = vst.msk [vmem:[#allocation2] sm:$0xff] %vm217, %v224
        %p243 = scmp.eq.s32.totalorder %s21, 2
        // Predicated region
        $region37: #{tpu_custom_call.1} parent=27 // pred_check
          %p244 = pneg %p243
        $region38: #{tpu_custom_call.1} parent=27 // pred_check_branch
          %246 = sbr.rel (%p244) target = $region40
        $region39: #{tpu_custom_call.1} parent=27 // pred_region
          %v247 = vld [vmem:[#allocation4] sm:$0xff]
          %v248 = vld [vmem:[#allocation2] sm:$0xff]
          %v249 = vmax.f32 %v247, -0.9999999
          %v250 = vmin.f32 %v249, 0.9999999
          %v251 = vmul.f32 %v250, 0.87758255
          %v252 = vmul.f32 %v250, %v250
          %v253 = vsub.f32 1.0, %v252
          %v254 = vrsqrt.pop %v253
          %v255 = vmul.f32 %v253, %v254
          %vm256 = vcmp.eq.f32.partialorder %v253, inf
          %v257 = vsel %vm256, %v253, %v255
          %vm258 = vcmp.eq.f32.partialorder %v253, 0.0
          %v259 = vand.u32 %v253, 2147483648
          %v260 = vsel %vm258, %v259, %v257
          %v261 = vmul.f32 %v260, 0.47942555
          %v262 = vsub.f32 %v251, %v261
          %v263 = vmul.f32 %v262, 64.0
          %v264 = vld [vmem:[#allocation3] sm:$0xff]
          %v265 = vmul.f32 %v247, 64.0
          %v266 = vsub.f32 %v265, %v248
          %v267 = vmul.f32 %v266, 1.442695
          %v268 = vpow.pop %v267
          %v269 = vsub.f32 %v264, %v268
          %v270 = vmax.f32 %v269, 0.0
          %v271 = vsub.f32 %v263, %v248
          %v272 = vmul.f32 %v271, 1.442695
          %v273 = vpow.pop %v272
          %v274 = vadd.f32 %v273, %v270
          %v275 = vlog2.pop %v274
          %v276 = vmul.f32 %v275, 0.6931472
          %v277 = vadd.f32 %v248, %v276
          %v278 = vsub.f32 %v263, %v277
          %279 = vst.msk [vmem:[%s191] sm:$0xff] %vm217, %v278
        $region40: #{tpu_custom_call.1} parent=27 // pred_fallthru
          _
        %p280 = scmp.lt.s32.totalorder %s20, 1
        %s281 = scalar_select %p280, %s20, 1
        %s282 = smul.addr %s281, 8
        %s283 = scalar_lea.vmem %s2, %s282
        // Predicated region
        $region41: #{tpu_custom_call.1} parent=27 // pred_check
          %p284 = pneg %p100
        $region42: #{tpu_custom_call.1} parent=27 // pred_check_branch
          %286 = sbr.rel (%p284) target = $region44
        $region43: #{tpu_custom_call.1} parent=27 // pred_region
          _
        $region44: #{tpu_custom_call.1} parent=27 // pred_fallthru
          _
      $region28: #{tpu_custom_call.1} parent=5 // pred_fallthru
        _
      %p287 = scmp.le.s32.totalorder 2, %s11
      // Predicated region
      $region45: #{tpu_custom_call.1} parent=5 // pred_check
        %p288 = pneg %p287
      $region46: #{tpu_custom_call.1} parent=5 // pred_check_branch
        %290 = sbr.rel (%p288) target = $region48
      $region47: #{tpu_custom_call.1} parent=5 // pred_region
        %s291 = ssub.s32 %s11, 2
        // Predicated region
        $region49: #{tpu_custom_call.1} parent=47 // pred_check
          %p292 = pneg %p106
        $region50: #{tpu_custom_call.1} parent=47 // pred_check_branch
          %294 = sbr.rel (%p292) target = $region52
        $region51: #{tpu_custom_call.1} parent=47 // pred_region
          %p295 = scmp.lt.s32.totalorder %s22, 1
          %s296 = scalar_select %p295, %s22, 1
          %s297 = smul.addr %s296, 8
          %s298 = scalar_lea.vmem %s2, %s297
        $region52: #{tpu_custom_call.1} parent=47 // pred_fallthru
          _
      $region48: #{tpu_custom_call.1} parent=5 // pred_fallthru
        _
    $region6: #{tpu_custom_call.1} parent=1 // loop_footer
      %s15 = sadd.s32 1, %s11
    $region7: #{tpu_custom_call.1} parent=1 // loop_footer_branch
      %10 = sbr.rel target = $region3
    $region8: #{tpu_custom_call.1} parent=1 // loop_exit
      _
    %299 = vsyncpa [#allocation6], 1
    %s300 = scalar_lea.sflag [#allocation6], 1
    %301 = vsyncpa %s300, 1

</llo_original>
